<compile_context>
chip_gen: v7x
topology: tpu7x:2x2x1
jax: 0.10.0
libtpu: 0.0.40
codegen_flags: <defaults>
</compile_context>

<pallas_src>
import jax
import jax.numpy as jnp
from jax import lax
from jax.experimental import pallas as pl
from jax.experimental.pallas import tpu as pltpu


def _sigmoid_mlp_kernel(x_ref, w1_ref, b1_ref, w2_ref, b2_ref, ot_ref):
    # x : (tb, num_in) f32  (native layout; pipelined batch tile)
    # w1: (num_hidden, num_in) bf16 | b1: (num_hidden, 1) f32   (resident)
    # w2: (num_out, num_hidden) bf16 | b2: (num_out, 1) f32     (resident)
    # ot: (num_out, tb) f32  (lane-dense output tile)
    x_bf = x_ref[...].astype(jnp.bfloat16)                      # VPU cast, free

    # (num_hidden, num_in) x (tb, num_in) contracted on num_in -> (num_hidden, tb)
    h1 = lax.dot_general(
        w1_ref[...], x_bf,
        dimension_numbers=(((1,), (1,)), ((), ())),
        preferred_element_type=jnp.float32)
    h1 = jnp.maximum(h1 + b1_ref[...], 0.0)                     # bias + ReLU, f32

    logits = jnp.dot(w2_ref[...], h1.astype(jnp.bfloat16),
                     preferred_element_type=jnp.float32) + b2_ref[...]

    # sigmoid(z) = 0.5 * tanh(0.5 * z) + 0.5  (single EUP push, exact sigmoid)
    ot_ref[...] = (0.5 * jnp.tanh(0.5 * logits) + 0.5).astype(ot_ref.dtype)


def sigmoid_model_forward(x, w1, b1, w2, b2, *, block_b=1024, transpose_output=True):
    """SigmoidModel forward pass.

    x : (B, num_in) float32
    w1: (num_hidden, num_in),  b1: (num_hidden,)   -- PyTorch nn.Linear layout
    w2: (num_out, num_hidden), b2: (num_out,)
    Returns (B, num_out) float32 probabilities (or (num_out, B) if
    transpose_output=False, which skips one HBM read+write pass).
    """
    B, num_in = x.shape
    num_hidden = w1.shape[0]
    num_out = w2.shape[0]

    # --- batch padding + tile selection -------------------------------------
    # Pad B up to a multiple of 128 so every block is lane-dense and pipelined.
    Bp = ((B + 127) // 128) * 128
    x_p = x if Bp == B else jnp.pad(x, ((0, Bp - B), (0, 0)))

    # VMEM budget: double-buffered input (tb, num_in) f32 + output (num_out, tb) f32
    # tiles dominate; keep them well under the smallest default scoped limit
    # (v7x: 32 MiB) with generous headroom for weights / f32 temporaries.
    per_col_bytes = 2 * 4 * (num_in + num_out)          # 2 buffers, f32
    vmem_budget = 16 * 1024 * 1024
    max_tb_vmem = max(128, (vmem_budget // max(per_col_bytes, 1)) // 128 * 128)

    tb = min(block_b, Bp, max_tb_vmem)
    tb = max(128, (tb // 128) * 128)
    while Bp % tb != 0:                                   # Bp is a multiple of 128,
        tb -= 128                                         # so this terminates at 128
    # v7x nicety: keep grid length >= 2 (and even) so ("parallel",) can use both TCs.
    if Bp // tb == 1 and Bp >= 256 and (Bp // 2) % 128 == 0:
        tb = Bp // 2
    grid = (Bp // tb,)

    # --- operand prep (layout plumbing only; no extra HBM pass for x) -------
    w1b = w1.astype(jnp.bfloat16)                         # (num_hidden, num_in)
    w2b = w2.astype(jnp.bfloat16)                         # (num_out, num_hidden)
    b1c = b1.reshape(num_hidden, 1).astype(jnp.float32)
    b2c = b2.reshape(num_out, 1).astype(jnp.float32)

    flops = 2 * Bp * (num_in * num_hidden + num_hidden * num_out)
    bytes_accessed = (x_p.size * 4 + w1b.size * 2 + w2b.size * 2
                      + b1c.size * 4 + b2c.size * 4 + Bp * num_out * 4)

    out_t = pl.pallas_call(
        _sigmoid_mlp_kernel,
        out_shape=jax.ShapeDtypeStruct((num_out, Bp), jnp.float32),
        grid=grid,
        in_specs=[
            pl.BlockSpec((tb, num_in), lambda i: (i, 0)),          # x tile (pipelined)
            pl.BlockSpec((num_hidden, num_in), lambda i: (0, 0)),  # resident weights
            pl.BlockSpec((num_hidden, 1), lambda i: (0, 0)),
            pl.BlockSpec((num_out, num_hidden), lambda i: (0, 0)),
            pl.BlockSpec((num_out, 1), lambda i: (0, 0)),
        ],
        out_specs=pl.BlockSpec((num_out, tb), lambda i: (0, i)),   # lane-dense stores
        compiler_params=pltpu.CompilerParams(
            dimension_semantics=("parallel",)),
        cost_estimate=pl.CostEstimate(
            flops=flops,
            transcendentals=Bp * num_out,
            bytes_accessed=bytes_accessed),
    )(x_p, w1b, b1c, w2b, b2c)

    out_t = out_t[:, :B]                                  # drop batch padding
    return out_t.T if transpose_output else out_t


def init_params(num_in, num_hidden, num_out, key):
    """Mimics nn.Linear default init: U(-1/sqrt(fan_in), 1/sqrt(fan_in))."""
    k1, k2, k3, k4 = jax.random.split(key, 4)

    def unif(k, shape, fan_in):
        bound = 1.0 / (fan_in ** 0.5)
        return jax.random.uniform(k, shape, jnp.float32, -bound, bound)

    w1 = unif(k1, (num_hidden, num_in), num_in)
    b1 = unif(k2, (num_hidden,), num_in)
    w2 = unif(k3, (num_out, num_hidden), num_hidden)
    b2 = unif(k4, (num_out,), num_hidden)
    return w1, b1, w2, b2


if __name__ == "__main__":
    # Small shapes consistent with the module's MLP forward.
    B, num_in, num_hidden, num_out = 8, 16, 32, 4

    key = jax.random.PRNGKey(0)
    kx, kp = jax.random.split(key)
    x = jax.random.normal(kx, (B, num_in), jnp.float32)
    w1, b1, w2, b2 = init_params(num_in, num_hidden, num_out, kp)

    out = sigmoid_model_forward(x, w1, b1, w2, b2)
    out = jax.block_until_ready(out)
    assert out.shape == (B, num_out)

    # Reference mirroring the kernel's bf16-operand / f32-accumulate matmuls.
    h1 = jnp.maximum(
        jnp.dot(x.astype(jnp.bfloat16), w1.T.astype(jnp.bfloat16),
                preferred_element_type=jnp.float32) + b1, 0.0)
    logits = jnp.dot(h1.astype(jnp.bfloat16), w2.T.astype(jnp.bfloat16),
                     preferred_element_type=jnp.float32) + b2
    ref = jax.nn.sigmoid(logits)

    assert jnp.allclose(out, ref, atol=2e-3, rtol=2e-3), \
        float(jnp.max(jnp.abs(out - ref)))
    assert bool(jnp.all((out >= 0.0) & (out <= 1.0)))

    print("KERNEL_OK")
</pallas_src>

<mosaic_0001>
module attributes {stable_mosaic.version = 11 : i64} {
  func.func @_sigmoid_mlp_kernel(%arg0: i32, %arg1: memref<128x16xf32, #tpu.memory_space<vmem>>, %arg2: memref<32x16xbf16, #tpu.memory_space<vmem>>, %arg3: memref<32x1xf32, #tpu.memory_space<vmem>>, %arg4: memref<4x32xbf16, #tpu.memory_space<vmem>>, %arg5: memref<4x1xf32, #tpu.memory_space<vmem>>, %arg6: memref<4x128xf32, #tpu.memory_space<vmem>>) attributes {dimension_semantics = [#tpu.dimension_semantics<parallel>], iteration_bounds = array<i64: 1>, scalar_prefetch = 0 : i64, scratch_operands = 0 : i64, tpu.core_type = #tpu.core_type<tc>, window_params = [{transform_indices = @transform_0, window_bounds = array<i64: 128, 16>}, {pipeline_mode = #tpu.pipeline_mode<synchronous>, transform_indices = @transform_1, window_bounds = array<i64: 32, 16>}, {pipeline_mode = #tpu.pipeline_mode<synchronous>, transform_indices = @transform_2, window_bounds = array<i64: 32, 1>}, {pipeline_mode = #tpu.pipeline_mode<synchronous>, transform_indices = @transform_3, window_bounds = array<i64: 4, 32>}, {pipeline_mode = #tpu.pipeline_mode<synchronous>, transform_indices = @transform_4, window_bounds = array<i64: 4, 1>}, {transform_indices = @transform_5, window_bounds = array<i64: 4, 128>}]} {
    %c0 = arith.constant 0 : index
    %c0_0 = arith.constant 0 : index
    %0 = vector.load %arg1[%c0, %c0_0] : memref<128x16xf32, #tpu.memory_space<vmem>>, vector<128x16xf32>
    %1 = arith.truncf %0 : vector<128x16xf32> to vector<128x16xbf16>
    %c0_1 = arith.constant 0 : index
    %c0_2 = arith.constant 0 : index
    %2 = vector.load %arg2[%c0_1, %c0_2] : memref<32x16xbf16, #tpu.memory_space<vmem>>, vector<32x16xbf16>
    %cst = arith.constant dense<0.000000e+00> : vector<32x128xf32>
    %3 = tpu.matmul %2, %1, %cst {dimension_numbers = #tpu.dot_dimension_numbers<[1], [1], [0], [0], [0, 0, 1, 0], [], []>} : vector<32x16xbf16>, vector<128x16xbf16>, vector<32x128xf32> -> vector<32x128xf32>
    %c0_3 = arith.constant 0 : index
    %c0_4 = arith.constant 0 : index
    %4 = vector.load %arg3[%c0_3, %c0_4] : memref<32x1xf32, #tpu.memory_space<vmem>>, vector<32x1xf32>
    %5 = vector.broadcast %4 : vector<32x1xf32> to vector<32x128xf32>
    %6 = arith.addf %3, %5 : vector<32x128xf32>
    %cst_5 = arith.constant 0.000000e+00 : f32
    %7 = vector.broadcast %cst_5 : f32 to vector<32x128xf32>
    %8 = arith.maximumf %6, %7 : vector<32x128xf32>
    %c0_6 = arith.constant 0 : index
    %c0_7 = arith.constant 0 : index
    %9 = vector.load %arg4[%c0_6, %c0_7] : memref<4x32xbf16, #tpu.memory_space<vmem>>, vector<4x32xbf16>
    %10 = arith.truncf %8 : vector<32x128xf32> to vector<32x128xbf16>
    %cst_8 = arith.constant dense<0.000000e+00> : vector<4x128xf32>
    %11 = tpu.matmul %9, %10, %cst_8 {dimension_numbers = #tpu.dot_dimension_numbers<[1], [0], [0], [1], [0, 0, 1, 1], [], []>} : vector<4x32xbf16>, vector<32x128xbf16>, vector<4x128xf32> -> vector<4x128xf32>
    %c0_9 = arith.constant 0 : index
    %c0_10 = arith.constant 0 : index
    %12 = vector.load %arg5[%c0_9, %c0_10] : memref<4x1xf32, #tpu.memory_space<vmem>>, vector<4x1xf32>
    %13 = vector.broadcast %12 : vector<4x1xf32> to vector<4x128xf32>
    %14 = arith.addf %11, %13 : vector<4x128xf32>
    %cst_11 = arith.constant 5.000000e-01 : f32
    %15 = vector.broadcast %cst_11 : f32 to vector<4x128xf32>
    %16 = arith.mulf %15, %14 : vector<4x128xf32>
    %17 = math.tanh %16 : vector<4x128xf32>
    %cst_12 = arith.constant 5.000000e-01 : f32
    %18 = vector.broadcast %cst_12 : f32 to vector<4x128xf32>
    %19 = arith.mulf %18, %17 : vector<4x128xf32>
    %cst_13 = arith.constant 5.000000e-01 : f32
    %20 = vector.broadcast %cst_13 : f32 to vector<4x128xf32>
    %21 = arith.addf %19, %20 : vector<4x128xf32>
    %c0_14 = arith.constant 0 : index
    %c0_15 = arith.constant 0 : index
    %22 = vector.load %arg6[%c0_14, %c0_15] : memref<4x128xf32, #tpu.memory_space<vmem>>, vector<4x128xf32>
    tpu.vector_store %arg6[%c0_14, %c0_15], %21 {strides = array<i32>} : memref<4x128xf32, #tpu.memory_space<vmem>>, vector<4x128xf32>,
    return
  }
  func.func @transform_0(%arg0: i32) -> (i32, i32) {
    %c0_i32 = arith.constant 0 : i32
    %c0_i32_0 = arith.constant 0 : i32
    return %arg0, %c0_i32 : i32, i32
  }
  func.func @transform_1(%arg0: i32) -> (i32, i32) {
    %c0_i32 = arith.constant 0 : i32
    %c0_i32_0 = arith.constant 0 : i32
    %c0_i32_1 = arith.constant 0 : i32
    return %c0_i32, %c0_i32_0 : i32, i32
  }
  func.func @transform_2(%arg0: i32) -> (i32, i32) {
    %c0_i32 = arith.constant 0 : i32
    %c0_i32_0 = arith.constant 0 : i32
    %c0_i32_1 = arith.constant 0 : i32
    return %c0_i32, %c0_i32_0 : i32, i32
  }
  func.func @transform_3(%arg0: i32) -> (i32, i32) {
    %c0_i32 = arith.constant 0 : i32
    %c0_i32_0 = arith.constant 0 : i32
    %c0_i32_1 = arith.constant 0 : i32
    return %c0_i32, %c0_i32_0 : i32, i32
  }
  func.func @transform_4(%arg0: i32) -> (i32, i32) {
    %c0_i32 = arith.constant 0 : i32
    %c0_i32_0 = arith.constant 0 : i32
    %c0_i32_1 = arith.constant 0 : i32
    return %c0_i32, %c0_i32_0 : i32, i32
  }
  func.func @transform_5(%arg0: i32) -> (i32, i32) {
    %c0_i32 = arith.constant 0 : i32
    %c0_i32_0 = arith.constant 0 : i32
    return %c0_i32, %arg0 : i32, i32
  }
}

</mosaic_0001>

<llo_original>
// kernel: tpu_custom_call.1
$region0: #{tpu_custom_call.1}
  #allocation0 [shape = 'u32[]', space=smem, size = 0x4, offset = 0x4, fixed_abs, tag = 'smem constant byte address 0x4 - core index']
  #allocation1 [shape = 'u32[144,128]{1,0:T(1,128)}', space=vmem, size = 0x12000, scoped, tag = 'internal scratch']
  %s0 = inlined_call_operand.vmem [shape: f32[128,16], index: 0, kind: input, shape index: {}]
  %s1 = inlined_call_operand.vmem [shape: bf16[32,16], index: 1, kind: input, shape index: {}]
  %s2 = inlined_call_operand.vmem [shape: f32[32,1], index: 2, kind: input, shape index: {}]
  %s3 = inlined_call_operand.vmem [shape: bf16[4,32], index: 3, kind: input, shape index: {}]
  %s4 = inlined_call_operand.vmem [shape: f32[4,1], index: 4, kind: input, shape index: {}]
  %s5 = inlined_call_operand.hbm [shape: f32[4,128], index: 5, kind: output, shape index: {}]
  %s6 = sld [smem:[#allocation0]]
  $region30: #{tpu_custom_call.1} parent=0
    _
  %s8 = ssub.s32 1, %s6
  %s9 = scalar_select 0, %s8, %s6
  $region1: #{tpu_custom_call.1} parent=0
    #allocation2 [shape = 'u8[2048]{0}', space=vmem, size = 0x800, scoped, tag = 'output window, operand 0, single buffered']
    #allocation3 [shape = 's32[1]{0}', space=sflag, size = 0x4, scoped, tag = 'scoped memory for tpu_custom_call.1']
    %10 = vsyncpa [#allocation3], 0
    // Predicated region
    $region2: #{tpu_custom_call.1} parent=1 // pred_check
      _
    $region3: #{tpu_custom_call.1} parent=1 // pred_check_branch
      %12 = sbr.rel (0) target = $region5
    $region4: #{tpu_custom_call.1} parent=1 // pred_region
      _
    $region5: #{tpu_custom_call.1} parent=1 // pred_fallthru
      _
    // Predicated region
    $region6: #{tpu_custom_call.1} parent=1 // pred_check
      _
    $region7: #{tpu_custom_call.1} parent=1 // pred_check_branch
      %14 = sbr.rel (0) target = $region9
    $region8: #{tpu_custom_call.1} parent=1 // pred_region
      _
    $region9: #{tpu_custom_call.1} parent=1 // pred_fallthru
      _
    // Predicated region
    $region10: #{tpu_custom_call.1} parent=1 // pred_check
      _
    $region11: #{tpu_custom_call.1} parent=1 // pred_check_branch
      %16 = sbr.rel (0) target = $region13
    $region12: #{tpu_custom_call.1} parent=1 // pred_region
      _
    $region13: #{tpu_custom_call.1} parent=1 // pred_fallthru
      _
    // Predicated region
    $region14: #{tpu_custom_call.1} parent=1 // pred_check
      _
    $region15: #{tpu_custom_call.1} parent=1 // pred_check_branch
      %18 = sbr.rel (0) target = $region17
    $region16: #{tpu_custom_call.1} parent=1 // pred_region
      _
    $region17: #{tpu_custom_call.1} parent=1 // pred_fallthru
      _
    // Predicated region
    $region18: #{tpu_custom_call.1} parent=1 // pred_check
      _
    $region19: #{tpu_custom_call.1} parent=1 // pred_check_branch
      %20 = sbr.rel (0) target = $region21
    $region20: #{tpu_custom_call.1} parent=1 // pred_region
      _
    $region21: #{tpu_custom_call.1} parent=1 // pred_fallthru
      _
    %v22 = vld [vmem:[%s0] sm:$0xff]
    %v23 = vld [vmem:[%s0 + $0x8] sm:$0xff]
    %v24 = vld [vmem:[%s0 + $0x10] sm:$0xff]
    %v25 = vld [vmem:[%s0 + $0x18] sm:$0xff]
    %v26 = vld [vmem:[%s0 + $0x20] sm:$0xff]
    %v27 = vld [vmem:[%s0 + $0x28] sm:$0xff]
    %v28 = vld [vmem:[%s0 + $0x30] sm:$0xff]
    %v29 = vld [vmem:[%s0 + $0x38] sm:$0xff]
    %v30 = vld [vmem:[%s0 + $0x40] sm:$0xff]
    %v31 = vld [vmem:[%s0 + $0x48] sm:$0xff]
    %v32 = vld [vmem:[%s0 + $0x50] sm:$0xff]
    %v33 = vld [vmem:[%s0 + $0x58] sm:$0xff]
    %v34 = vld [vmem:[%s0 + $0x60] sm:$0xff]
    %v35 = vld [vmem:[%s0 + $0x68] sm:$0xff]
    %v36 = vld [vmem:[%s0 + $0x70] sm:$0xff]
    %v37 = vld [vmem:[%s0 + $0x78] sm:$0xff]
    %v38 = vpack.c.bf16 %v23, %v22
    %v39 = vpack.c.bf16 %v25, %v24
    %v40 = vpack.c.bf16 %v27, %v26
    %v41 = vpack.c.bf16 %v29, %v28
    %v42 = vpack.c.bf16 %v31, %v30
    %v43 = vpack.c.bf16 %v33, %v32
    %v44 = vpack.c.bf16 %v35, %v34
    %v45 = vpack.c.bf16 %v37, %v36
    %v46 = vld [vmem:[%s1] sm:$0xf]
    %v47 = vld [vmem:[%s1 + $0x4] sm:$0xf]
    %v48 = vld [vmem:[%s1 + $0x8] sm:$0xf]
    %v49 = vld [vmem:[%s1 + $0xc] sm:$0xf]
    %v50 = vld [vmem:[%s2] sm:$0xff]
    %v51 = vld [vmem:[%s2 + $0x8] sm:$0xff]
    %v52 = vld [vmem:[%s2 + $0x10] sm:$0xff]
    %v53 = vld [vmem:[%s2 + $0x18] sm:$0xff]
    %55 = vset.pattern.permute.xlu0 0
    %56 = vperm.xlu0 %55, %v50
    %v57 = vpop.permute.xlu0 %56
    %60 = vset.pattern.permute.xlu0 0
    %61 = vperm.xlu0 %60, %v51
    %v62 = vpop.permute.xlu0 %61
    %65 = vset.pattern.permute.xlu0 0
    %66 = vperm.xlu0 %65, %v52
    %v67 = vpop.permute.xlu0 %66
    %70 = vset.pattern.permute.xlu0 0
    %71 = vperm.xlu0 %70, %v53
    %v72 = vpop.permute.xlu0 %71
    %v78 = vunpack.c.l.b16 %v46
    %v79 = vunpack.c.l.b16 %v47
    %v80 = vunpack.c.l.b16 %v48
    %v81 = vunpack.c.l.b16 %v49
    %v82 = vpack.c.b16 %v79, %v78
    %v83 = vpack.c.b16 %v81, %v80
    %vm84 = vcmask 130048
    %v86 = vsel %vm84, %v82, 0
    %v89 = vsel %vm84, %v83, 0
    %v92 = vsel %vm84, %v38, 0
    %v95 = vsel %vm84, %v39, 0
    %v98 = vsel %vm84, %v40, 0
    %v101 = vsel %vm84, %v41, 0
    %v104 = vsel %vm84, %v42, 0
    %v107 = vsel %vm84, %v43, 0
    %v110 = vsel %vm84, %v44, 0
    %v113 = vsel %vm84, %v45, 0
    %115 = vmatprep.subr.bf16.mxu0 0
    %116 = vmatpush1.bf16.xpose.msra.mxu0 %v92
    %117 = vmatprep.subr.bf16.mxu0 0
    %118 = vmatpush1.bf16.xpose.msra.mxu0 %v95
    %119 = vmatprep.subr.bf16.mxu0 0
    %120 = vmatpush1.bf16.xpose.msra.mxu0 %v98
    %121 = vmatprep.subr.bf16.mxu0 0
    %122 = vmatpush1.bf16.xpose.msra.mxu0 %v101
    %123 = vmatprep.subr.bf16.mxu0 0
    %124 = vmatpush1.bf16.xpose.msra.mxu0 %v104
    %125 = vmatprep.subr.bf16.mxu0 0
    %126 = vmatpush1.bf16.xpose.msra.mxu0 %v107
    %127 = vmatprep.subr.bf16.mxu0 0
    %128 = vmatpush1.bf16.xpose.msra.mxu0 %v110
    %129 = vmatprep.subr.bf16.mxu0 0
    %130 = vmatpush1.bf16.xpose.msra.mxu0 %v113
    %131 = vmatprep.subr.bf16.mxu0 0
    %132 = vmatpush1.bf16.xpose.msra.mxu0 0
    %133 = vmatprep.subr.bf16.mxu0 0
    %134 = vmatpush1.bf16.xpose.msra.mxu0 0
    %135 = vmatprep.subr.bf16.mxu0 0
    %136 = vmatpush1.bf16.xpose.msra.mxu0 0
    %137 = vmatprep.subr.bf16.mxu0 0
    %138 = vmatpush1.bf16.xpose.msra.mxu0 0
    %139 = vmatprep.subr.bf16.mxu0 0
    %140 = vmatpush1.bf16.xpose.msra.mxu0 0
    %141 = vmatprep.subr.bf16.mxu0 0
    %142 = vmatpush1.bf16.xpose.msra.mxu0 0
    %143 = vmatprep.subr.bf16.mxu0 0
    %144 = vmatpush1.bf16.xpose.msra.mxu0 0
    %145 = vmatprep.subr.bf16.mxu0 0
    %146 = vmatpush1.bf16.xpose.msra.mxu0 0
    %147 = vmatprep.mubr.bf16.mxu0 0
    %148 = vmatmul.mubr.bf16.gmra.mrb[0].mxu0 %v86
    %v149 = vpop.f32.mrb[0].mxu0
    %v150 = vadd.f32 %v57, %v149
    %v151 = vpop.f32.mrb[0].mxu0
    %v152 = vpop.f32.mrb[0].mxu0
    %v153 = vadd.f32 %v62, %v152
    %v154 = vpop.f32.mrb[0].mxu0
    %155 = vmatprep.mubr.bf16.mxu0 0
    %156 = vmatmul.mubr.bf16.gmra.mrb[0].mxu0 %v89
    %v157 = vpop.f32.mrb[0].mxu0
    %v158 = vadd.f32 %v67, %v157
    %v159 = vpop.f32.mrb[0].mxu0
    %v160 = vpop.f32.mrb[0].mxu0
    %v161 = vadd.f32 %v72, %v160
    %v162 = vpop.f32.mrb[0].mxu0
    %163 = vdwg.mxu0
    %v164 = vmax.f32 %v150, 0.0
    %v165 = vmax.f32 %v153, 0.0
    %v166 = vmax.f32 %v158, 0.0
    %v167 = vmax.f32 %v161, 0.0
    %v168 = vld [vmem:[%s3] sm:$0x3]
    %v169 = vpack.c.bf16 %v165, %v164
    %v170 = vpack.c.bf16 %v167, %v166
    %v171 = vld [vmem:[%s4] sm:$0xf]
    %173 = vset.pattern.permute.xlu0 0
    %174 = vperm.xlu0 %173, %v171
    %v175 = vpop.permute.xlu0 %174
    %vm177 = vcmask 261120
    %v179 = vsel %vm177, %v168, 0
    %181 = vmatprep.subr.bf16.mxu0 0
    %182 = vmatpush1.bf16.msra.mxu0 %v169
    %183 = vmatprep.subr.bf16.mxu0 0
    %184 = vmatpush1.bf16.msra.mxu0 %v170
    %185 = vmatprep.subr.bf16.mxu0 0
    %186 = vmatpush1.bf16.msra.mxu0 0
    %187 = vmatprep.subr.bf16.mxu0 0
    %188 = vmatpush1.bf16.msra.mxu0 0
    %189 = vmatprep.subr.bf16.mxu0 0
    %190 = vmatpush1.bf16.msra.mxu0 0
    %191 = vmatprep.subr.bf16.mxu0 0
    %192 = vmatpush1.bf16.msra.mxu0 0
    %193 = vmatprep.subr.bf16.mxu0 0
    %194 = vmatpush1.bf16.msra.mxu0 0
    %195 = vmatprep.subr.bf16.mxu0 0
    %196 = vmatpush1.bf16.msra.mxu0 0
    %197 = vmatprep.subr.bf16.mxu0 0
    %198 = vmatpush1.bf16.msra.mxu0 0
    %199 = vmatprep.subr.bf16.mxu0 0
    %200 = vmatpush1.bf16.msra.mxu0 0
    %201 = vmatprep.subr.bf16.mxu0 0
    %202 = vmatpush1.bf16.msra.mxu0 0
    %203 = vmatprep.subr.bf16.mxu0 0
    %204 = vmatpush1.bf16.msra.mxu0 0
    %205 = vmatprep.subr.bf16.mxu0 0
    %206 = vmatpush1.bf16.msra.mxu0 0
    %207 = vmatprep.subr.bf16.mxu0 0
    %208 = vmatpush1.bf16.msra.mxu0 0
    %209 = vmatprep.subr.bf16.mxu0 0
    %210 = vmatpush1.bf16.msra.mxu0 0
    %211 = vmatprep.subr.bf16.mxu0 0
    %212 = vmatpush1.bf16.msra.mxu0 0
    %213 = vmatprep.mubr.bf16.mxu0 0
    %214 = vmatmul.mubr.bf16.gmra.mrb[0].mxu0 %v179
    %v215 = vpop.f32.mrb[0].mxu0
    %v216 = vadd.f32 %v175, %v215
    %v217 = vpop.f32.mrb[0].mxu0
    %v218 = vpop.f32.mrb[0].mxu0
    %v219 = vpop.f32.mrb[0].mxu0
    %220 = vdwg.mxu0
    %v221 = vmul.f32 %v216, 0.5
    %v222 = vtanh.pop %v221
    %v223 = vmul.f32 %v222, 0.5
    %v224 = vadd.f32 %v223, 0.5
    %225 = vst [vmem:[#allocation2] sm:$0xf] %v224
    // Predicated region
    $region22: #{tpu_custom_call.1} parent=1 // pred_check
      _
    $region23: #{tpu_custom_call.1} parent=1 // pred_check_branch
      %227 = sbr.rel (0) target = $region25
    $region24: #{tpu_custom_call.1} parent=1 // pred_region
      %s229 = ssub.s32 64, 64
      %230 = vsyncadd [#allocation3], %s229
      %s232 = sshll.u32 [#allocation2], 4
      %s233 = int_to_ptr.vmem [resolvable:$true] %s232
      %235 = dma.vmem_to_hbm [thread:$0]  %s233, 64, %s5, [#allocation3]
    $region25: #{tpu_custom_call.1} parent=1 // pred_fallthru
      _
    // Predicated region
    $region26: #{tpu_custom_call.1} parent=1 // pred_check
      _
    $region27: #{tpu_custom_call.1} parent=1 // pred_check_branch
      %237 = sbr.rel (0) target = $region29
    $region28: #{tpu_custom_call.1} parent=1 // pred_region
      %238 = dma.done [#allocation3], 64
    $region29: #{tpu_custom_call.1} parent=1 // pred_fallthru
      _
    %239 = vsyncpa [#allocation3], 1

</llo_original>
